<compile_context>
chip_gen: v7x
topology: tpu7x:2x2x1
jax: 0.10.0
libtpu: 0.0.40
codegen_flags: <defaults>
</compile_context>

<pallas_src>
import jax
import jax.numpy as jnp
from jax.experimental import pallas as pl
from jax.experimental.pallas import tpu as pltpu

_LANE = 1024               # lane-dense last dim (multiple of 128)
_TM = 512                  # sublane rows per block: (512, 1024) f32 = 2 MiB
_MIN_PALLAS_ELEMS = 1024   # below this, a Pallas launch is pure overhead


def _add_one_kernel(x_ref, o_ref):
    # Elementwise hot path, computed in the input dtype (no up/down cast).
    o_ref[...] = x_ref[...] + 1


def meng_forward(x):
    """JAX/Pallas equivalent of Meng.forward: return input + 1 (same dtype/shape)."""
    x = jnp.asarray(x)

    # Fast path: scalar / tiny inputs -- skip the kernel launch entirely.
    if x.size < _MIN_PALLAS_ELEMS:
        return x + 1

    orig_shape = x.shape
    orig_size = x.size

    # Flatten and pad to a lane-dense (rows, 1024) slab -> unmasked full-lane
    # stores instead of masked vst.msk partial stores.
    flat = x.reshape(-1)
    padded = pl.cdiv(orig_size, _LANE) * _LANE
    if padded != orig_size:
        flat = jnp.pad(flat, (0, padded - orig_size))
    x2d = flat.reshape(-1, _LANE)
    rows = x2d.shape[0]

    # Block rows: either a multiple-of-8 tile, or the whole (small) row extent
    # (full-array blocks are exempt from the (8, 128) divisibility rule).
    tm = _TM if rows > _TM else rows
    grid = (pl.cdiv(rows, tm),)

    out2d = pl.pallas_call(
        _add_one_kernel,
        out_shape=jax.ShapeDtypeStruct(x2d.shape, x2d.dtype),
        grid=grid,
        in_specs=[pl.BlockSpec((tm, _LANE), lambda i: (i, 0))],
        out_specs=pl.BlockSpec((tm, _LANE), lambda i: (i, 0)),
        # Pure elementwise op: reuse the input slab's buffer for the output.
        input_output_aliases={0: 0},
        compiler_params=pltpu.CompilerParams(
            dimension_semantics=("parallel",),
        ),
    )(x2d)

    return out2d.reshape(-1)[:orig_size].reshape(orig_shape)


if __name__ == "__main__":
    key = jax.random.PRNGKey(0)

    # 1) The module's actual usage: a 0-d scalar (torch.tensor(1.0)).
    x_scalar = jnp.asarray(1.0, dtype=jnp.float32)
    out_scalar = jax.block_until_ready(meng_forward(x_scalar))
    assert out_scalar.shape == x_scalar.shape, (out_scalar.shape, x_scalar.shape)
    assert jnp.allclose(out_scalar, x_scalar + 1.0), out_scalar

    # 2) A small tensor that exercises the tiled Pallas path (2048 elements ->
    #    a lane-dense (2, 1024) slab).
    x = jax.random.normal(key, (2, 4, 16, 16), dtype=jnp.float32)
    out = jax.block_until_ready(meng_forward(x))
    assert out.shape == x.shape and out.dtype == x.dtype
    assert jnp.allclose(out, x + 1.0)

    # 3) dtype preservation (bf16 halves HBM traffic on the Pallas path).
    x_bf16 = jax.random.normal(key, (2, 4, 16, 16), dtype=jnp.bfloat16)
    out_bf16 = jax.block_until_ready(meng_forward(x_bf16))
    assert out_bf16.shape == x_bf16.shape and out_bf16.dtype == jnp.bfloat16
    assert jnp.allclose(out_bf16.astype(jnp.float32),
                        (x_bf16 + 1).astype(jnp.float32),
                        atol=1e-2, rtol=1e-2)

    print("KERNEL_OK")
</pallas_src>

<mosaic_0001>
module attributes {stable_mosaic.version = 11 : i64} {
  func.func @_add_one_kernel(%arg0: i32, %arg1: memref<2x1024xf32, #tpu.memory_space<vmem>>, %arg2: memref<2x1024xf32, #tpu.memory_space<vmem>>) attributes {dimension_semantics = [#tpu.dimension_semantics<parallel>], iteration_bounds = array<i64: 1>, scalar_prefetch = 0 : i64, scratch_operands = 0 : i64, tpu.core_type = #tpu.core_type<tc>, window_params = [{transform_indices = @transform_0, window_bounds = array<i64: 2, 1024>}, {transform_indices = @transform_1, window_bounds = array<i64: 2, 1024>}]} {
    %c0 = arith.constant 0 : index
    %c0_0 = arith.constant 0 : index
    %0 = vector.load %arg1[%c0, %c0_0] : memref<2x1024xf32, #tpu.memory_space<vmem>>, vector<2x1024xf32>
    %cst = arith.constant 1.000000e+00 : f32
    %1 = vector.broadcast %cst : f32 to vector<2x1024xf32>
    %2 = arith.addf %0, %1 : vector<2x1024xf32>
    %c0_1 = arith.constant 0 : index
    %c0_2 = arith.constant 0 : index
    %3 = vector.load %arg2[%c0_1, %c0_2] : memref<2x1024xf32, #tpu.memory_space<vmem>>, vector<2x1024xf32>
    tpu.vector_store %arg2[%c0_1, %c0_2], %2 {strides = array<i32>} : memref<2x1024xf32, #tpu.memory_space<vmem>>, vector<2x1024xf32>,
    return
  }
  func.func @transform_0(%arg0: i32) -> (i32, i32) {
    %c0_i32 = arith.constant 0 : i32
    %c0_i32_0 = arith.constant 0 : i32
    return %arg0, %c0_i32 : i32, i32
  }
  func.func @transform_1(%arg0: i32) -> (i32, i32) {
    %c0_i32 = arith.constant 0 : i32
    %c0_i32_0 = arith.constant 0 : i32
    return %arg0, %c0_i32 : i32, i32
  }
}

</mosaic_0001>

<llo_original>
// kernel: tpu_custom_call.1
$region0: #{tpu_custom_call.1}
  #allocation0 [shape = 'u32[]', space=smem, size = 0x4, offset = 0x4, fixed_abs, tag = 'smem constant byte address 0x4 - core index']
  #allocation1 [shape = 'u32[144,128]{1,0:T(1,128)}', space=vmem, size = 0x12000, scoped, tag = 'internal scratch']
  %s0 = inlined_call_operand.hbm [shape: f32[2,1024], index: 0, kind: input, shape index: {}, may-alias: {0,1}]
  %s1 = inlined_call_operand.hbm [shape: f32[2,1024], index: 1, kind: output, shape index: {}, may-alias: {0,1}]
  %s2 = sld [smem:[#allocation0]]
  $region18: #{tpu_custom_call.1} parent=0
    _
  %s4 = ssub.s32 1, %s2
  %s5 = scalar_select 0, %s4, %s2
  $region1: #{tpu_custom_call.1} parent=0
    #allocation2 [shape = 'u8[8192]{0}', space=vmem, size = 0x2000, scoped, tag = 'input window, operand 0, single buffered']
    #allocation3 [shape = 's32[1]{0}', space=sflag, size = 0x4, scoped, tag = 'scoped memory for tpu_custom_call.1']
    #allocation4 [shape = 's32[1]{0}', space=sflag, size = 0x4, scoped, tag = 'scoped memory for tpu_custom_call.1']
    #allocation5 [shape = 'u8[8192]{0}', space=vmem, size = 0x2000, scoped, tag = 'output window, operand 0, single buffered']
    %6 = vsyncpa [#allocation3], 0
    %7 = vsyncpa [#allocation4], 0
    // Predicated region
    $region2: #{tpu_custom_call.1} parent=1 // pred_check
      _
    $region3: #{tpu_custom_call.1} parent=1 // pred_check_branch
      %9 = sbr.rel (0) target = $region5
    $region4: #{tpu_custom_call.1} parent=1 // pred_region
      %s11 = ssub.s32 256, 256
      %12 = vsyncadd [#allocation3], %s11
      %s14 = sshll.u32 [#allocation2], 4
      %s15 = int_to_ptr.vmem [resolvable:$true] %s14
      %17 = dma.hbm_to_vmem [thread:$0]  %s0, 256, %s15, [#allocation3]
    $region5: #{tpu_custom_call.1} parent=1 // pred_fallthru
      _
    // Predicated region
    $region6: #{tpu_custom_call.1} parent=1 // pred_check
      _
    $region7: #{tpu_custom_call.1} parent=1 // pred_check_branch
      %19 = sbr.rel (0) target = $region9
    $region8: #{tpu_custom_call.1} parent=1 // pred_region
      %20 = dma.done [#allocation3], 256
    $region9: #{tpu_custom_call.1} parent=1 // pred_fallthru
      _
    %v21 = vld [vmem:[#allocation2] sm:$0xff]
    %v22 = vld [vmem:[#allocation2 + $0x8] sm:$0xff]
    %v23 = vadd.f32 %v21, 1.0
    %v24 = vadd.f32 %v22, 1.0
    %25 = vst [vmem:[#allocation5] sm:$0xff] %v23
    %26 = vst [vmem:[#allocation5 + $0x8] sm:$0xff] %v24
    // Predicated region
    $region10: #{tpu_custom_call.1} parent=1 // pred_check
      _
    $region11: #{tpu_custom_call.1} parent=1 // pred_check_branch
      %28 = sbr.rel (0) target = $region13
    $region12: #{tpu_custom_call.1} parent=1 // pred_region
      %s30 = ssub.s32 256, 256
      %31 = vsyncadd [#allocation4], %s30
      %s33 = sshll.u32 [#allocation5], 4
      %s34 = int_to_ptr.vmem [resolvable:$true] %s33
      %36 = dma.vmem_to_hbm [thread:$0]  %s34, 256, %s1, [#allocation4]
    $region13: #{tpu_custom_call.1} parent=1 // pred_fallthru
      _
    // Predicated region
    $region14: #{tpu_custom_call.1} parent=1 // pred_check
      _
    $region15: #{tpu_custom_call.1} parent=1 // pred_check_branch
      %38 = sbr.rel (0) target = $region17
    $region16: #{tpu_custom_call.1} parent=1 // pred_region
      %39 = dma.done [#allocation4], 256
    $region17: #{tpu_custom_call.1} parent=1 // pred_fallthru
      _
    %40 = vsyncpa [#allocation3], 1
    %41 = vsyncpa [#allocation4], 1

</llo_original>
